<compile_context>
chip_gen: v5e
topology: v5e:2x2
jax: 0.10.0
libtpu: 0.0.40
codegen_flags: <defaults>
</compile_context>

<pallas_src>
import jax
import jax.numpy as jnp
from jax.experimental import pallas as pl
from jax.experimental.pallas import tpu as pltpu


def _round_up(v, m):
    return (v + m - 1) // m * m


def stg_gconv_kernel(x_ref, a_ref, w1_ref, w2_ref, b1_ref, b2_ref, o_ref):
    # x_ref:  (Bb, N_pad, F_pad)       batch block of inputs (compute dtype)
    # a_ref:  (N_pad, N_pad)  f32      supports / adjacency
    # w1_ref: (F_pad, 2*D_pad)         [W1x | W1g] (compute dtype)
    # w2_ref: (F_pad, D_pad)           skip weights W2 (compute dtype)
    # b1_ref: (1, 2*D_pad)    f32      [b1x | b1g]
    # b2_ref: (1, D_pad)      f32      b2
    # o_ref:  (Bb, N_pad, D_pad)       output block (compute dtype)
    bb, n_pad, f_pad = x_ref.shape
    d_pad = o_ref.shape[-1]
    rows = bb * n_pad

    # Stage 1: tall projections over all Bb*N_pad rows (compute-dtype operands, f32 MXU
    # accumulation).  w1 packs x-part and gate -> 2*D_pad output lanes in one matmul.
    x2 = x_ref[...].reshape(rows, f_pad)
    proj = jnp.dot(x2, w1_ref[...], preferred_element_type=jnp.float32)   # [rows, 2*D_pad]
    skip = jnp.dot(x2, w2_ref[...], preferred_element_type=jnp.float32) + b2_ref[...]

    a = a_ref[...]      # f32 [N_pad, N_pad]
    b1 = b1_ref[...]    # f32 [1, 2*D_pad]

    # Stage 2: apply the graph aggregation LAST (A @ (X W) == (A @ X) W), per batch
    # element.  Static Python loop -> fully inlined for the scheduler, static slices,
    # all-f32 math, and each small matmul has 2*D_pad output lanes.
    for bi in range(bb):
        slab = proj[bi * n_pad:(bi + 1) * n_pad, :]
        agg = jnp.dot(a, slab, preferred_element_type=jnp.float32) + b1
        x_part = agg[:, :d_pad]          # lane-tile-aligned split at D_pad (free)
        gate = agg[:, d_pad:]
        sk = skip[bi * n_pad:(bi + 1) * n_pad, :]
        o_ref[bi] = ((x_part + sk) * jax.nn.sigmoid(gate)).astype(o_ref.dtype)


def stg_graph_conv(x, supports, w1, b1, w2, b2, *, batch_block=None,
                   compute_dtype=jnp.bfloat16):
    """x: [P, B, N, Din], supports: [N, N] (dense stand-in for torch.sparse.mm).
    w1: [P*Din, 2*Dout], b1: [2*Dout], w2: [P*Din, Dout], b2: [Dout].
    Returns [B, N, Dout] in compute_dtype."""
    p, b, n, din = x.shape
    feat = p * din
    dout = w2.shape[1]

    f_pad = _round_up(feat, 128)
    d_pad = _round_up(dout, 128)
    n_pad = _round_up(n, 16)      # 16 sublanes/vreg for bf16 (also fine for f32)

    # Batch block: keep >= 2 grid steps (v7x megacore) and >= ~512 rows/step when B allows.
    if batch_block is None:
        batch_block = max(1, 512 // n_pad)
    bb = max(1, min(batch_block, pl.cdiv(b, 2)))
    nb = pl.cdiv(b, bb)
    b_pad = nb * bb

    # Glue: x -> [B, N, P*Din] (patch-major feature concat), zero-pad batch/nodes/features.
    # TODO(synk): for very large x, read it in its native [P,B,N,Din] layout via a 4-D
    # BlockSpec and accumulate per-P partial projections in-kernel to avoid this extra
    # wrapper-side HBM pass over x.
    xbn = jnp.transpose(x, (1, 2, 0, 3)).reshape(b, n, feat)
    xbn = jnp.pad(xbn, ((0, b_pad - b), (0, n_pad - n), (0, f_pad - feat)))
    xbn = xbn.astype(compute_dtype)

    # supports stays f32: the aggregation is applied last, to f32 projections.
    a_p = jnp.pad(supports, ((0, n_pad - n), (0, n_pad - n))).astype(jnp.float32)

    # Single fused projection weight [W1x | W1g], each half padded to D_pad so the
    # x-part/gate split in the kernel lands on a 128-lane tile boundary.
    w1x = jnp.pad(w1[:, :dout], ((0, f_pad - feat), (0, d_pad - dout)))
    w1g = jnp.pad(w1[:, dout:], ((0, f_pad - feat), (0, d_pad - dout)))
    w1_p = jnp.concatenate([w1x, w1g], axis=1).astype(compute_dtype)      # [F_pad, 2*D_pad]
    w2_p = jnp.pad(w2, ((0, f_pad - feat), (0, d_pad - dout))).astype(compute_dtype)

    b1_p = jnp.concatenate([jnp.pad(b1[:dout], (0, d_pad - dout)),
                            jnp.pad(b1[dout:], (0, d_pad - dout))])
    b1_p = b1_p.reshape(1, 2 * d_pad).astype(jnp.float32)
    b2_p = jnp.pad(b2, (0, d_pad - dout)).reshape(1, d_pad).astype(jnp.float32)

    # VMEM budget: double-buffered x/out blocks + resident operands (conservatively also
    # double-buffered) + f32 intermediates; x2 headroom, capped at 48 MiB (v7x-safe).
    cd_bytes = jnp.dtype(compute_dtype).itemsize
    rows = bb * n_pad
    need = (2 * (bb * n_pad * f_pad + bb * n_pad * d_pad) * cd_bytes
            + 2 * (3 * f_pad * d_pad * cd_bytes + n_pad * n_pad * 4 + 3 * d_pad * 4)
            + rows * (f_pad * cd_bytes + 3 * d_pad * 4))
    vmem_limit = int(min(max(2 * need, 16 * 1024 * 1024), 48 * 1024 * 1024))

    out = pl.pallas_call(
        stg_gconv_kernel,
        out_shape=jax.ShapeDtypeStruct((b_pad, n_pad, d_pad), compute_dtype),
        grid_spec=pltpu.PrefetchScalarGridSpec(
            num_scalar_prefetch=0,
            grid=(nb,),
            in_specs=[
                pl.BlockSpec((bb, n_pad, f_pad), lambda i: (i, 0, 0)),
                pl.BlockSpec((n_pad, n_pad), lambda i: (0, 0)),
                pl.BlockSpec((f_pad, 2 * d_pad), lambda i: (0, 0)),
                pl.BlockSpec((f_pad, d_pad), lambda i: (0, 0)),
                pl.BlockSpec((1, 2 * d_pad), lambda i: (0, 0)),
                pl.BlockSpec((1, d_pad), lambda i: (0, 0)),
            ],
            out_specs=pl.BlockSpec((bb, n_pad, d_pad), lambda i: (i, 0, 0)),
        ),
        compiler_params=pltpu.CompilerParams(
            dimension_semantics=("parallel",),
            vmem_limit_bytes=vmem_limit,
        ),
    )(xbn, a_p, w1_p, w2_p, b1_p, b2_p)

    # [B, N, Dout] in the compute dtype (no extra wrapper-side cast pass).
    return out[:b, :n, :dout]


def stg_graph_conv_reference(x, supports, w1, b1, w2, b2):
    """Pure-JAX transcription of the PyTorch forward, for correctness check."""
    p, b, n, din = x.shape
    dout = w2.shape[1]
    xf = jnp.transpose(x, (2, 1, 0, 3)).reshape(n, -1)
    xf = supports @ xf
    xf = jnp.transpose(xf.reshape(n, b, p * din), (1, 0, 2))
    lin = xf @ w1 + b1
    x_part, gate = lin[..., :dout], lin[..., dout:]
    inp = jnp.transpose(x, (1, 2, 0, 3)).reshape(b, n, -1) @ w2 + b2
    return (x_part + inp) * jax.nn.sigmoid(gate)


if __name__ == "__main__":
    # Small shapes consistent with the module.
    P, B, N, DIN, DOUT = 4, 2, 16, 8, 32
    FEAT = P * DIN

    key = jax.random.PRNGKey(0)
    kx, ka, kw1, kb1, kw2, kb2 = jax.random.split(key, 6)

    x = jax.random.normal(kx, (P, B, N, DIN), dtype=jnp.float32)
    # Dense "supports" (adjacency-like); torch.sparse.mm is reproduced as a dense matmul.
    supports = jax.random.uniform(ka, (N, N), dtype=jnp.float32)

    # nn.Linear-style init (uniform +-1/sqrt(fan_in)); weights stored transposed.
    bound = 1.0 / (FEAT ** 0.5)
    w1 = jax.random.uniform(kw1, (FEAT, 2 * DOUT), minval=-bound, maxval=bound, dtype=jnp.float32)
    b1 = jax.random.uniform(kb1, (2 * DOUT,), minval=-bound, maxval=bound, dtype=jnp.float32)
    w2 = jax.random.uniform(kw2, (FEAT, DOUT), minval=-bound, maxval=bound, dtype=jnp.float32)
    b2 = jax.random.uniform(kb2, (DOUT,), minval=-bound, maxval=bound, dtype=jnp.float32)

    # Default path (bf16 operands, f32 accumulation, bf16 output).
    out = stg_graph_conv(x, supports, w1, b1, w2, b2)
    out = jax.block_until_ready(out)
    assert out.shape == (B, N, DOUT)

    # Strict check: f32 compute path vs pure-JAX reference (A-last reordering only
    # changes f32 accumulation order).
    out_f32 = stg_graph_conv(x, supports, w1, b1, w2, b2, compute_dtype=jnp.float32)
    out_f32 = jax.block_until_ready(out_f32)
    ref_f32 = stg_graph_conv_reference(x, supports, w1, b1, w2, b2)
    assert jnp.allclose(out_f32, ref_f32, atol=1e-3, rtol=1e-3), "f32 mismatch vs reference"

    # Loose check for the bf16 path: compare against the reference evaluated on the same
    # bf16-quantised x/weights (supports stays f32 in both, matching the kernel).
    q = lambda a: a.astype(jnp.bfloat16).astype(jnp.float32)
    ref_bf16 = stg_graph_conv_reference(q(x), supports, q(w1), b1, q(w2), b2)
    assert jnp.allclose(out.astype(jnp.float32), ref_bf16, atol=1e-1, rtol=1e-2), \
        "bf16 mismatch vs reference"

    print("KERNEL_OK")
</pallas_src>

<mosaic_0001>
module attributes {stable_mosaic.version = 11 : i64} {
  func.func @stg_gconv_kernel(%arg0: i32, %arg1: memref<1x16x128xbf16, #tpu.memory_space<vmem>>, %arg2: memref<16x16xf32, #tpu.memory_space<vmem>>, %arg3: memref<128x256xbf16, #tpu.memory_space<vmem>>, %arg4: memref<128x128xbf16, #tpu.memory_space<vmem>>, %arg5: memref<1x256xf32, #tpu.memory_space<vmem>>, %arg6: memref<1x128xf32, #tpu.memory_space<vmem>>, %arg7: memref<1x16x128xbf16, #tpu.memory_space<vmem>>) attributes {dimension_semantics = [#tpu.dimension_semantics<parallel>], iteration_bounds = array<i64: 2>, scalar_prefetch = 0 : i64, scratch_operands = 0 : i64, tpu.core_type = #tpu.core_type<tc>, window_params = [{transform_indices = @transform_0, window_bounds = array<i64: 1, 16, 128>}, {pipeline_mode = #tpu.pipeline_mode<synchronous>, transform_indices = @transform_1, window_bounds = array<i64: 16, 16>}, {pipeline_mode = #tpu.pipeline_mode<synchronous>, transform_indices = @transform_2, window_bounds = array<i64: 128, 256>}, {pipeline_mode = #tpu.pipeline_mode<synchronous>, transform_indices = @transform_3, window_bounds = array<i64: 128, 128>}, {pipeline_mode = #tpu.pipeline_mode<synchronous>, transform_indices = @transform_4, window_bounds = array<i64: 1, 256>}, {pipeline_mode = #tpu.pipeline_mode<synchronous>, transform_indices = @transform_5, window_bounds = array<i64: 1, 128>}, {transform_indices = @transform_6, window_bounds = array<i64: 1, 16, 128>}]} {
    %c0 = arith.constant 0 : index
    %c0_0 = arith.constant 0 : index
    %c0_1 = arith.constant 0 : index
    %0 = vector.load %arg1[%c0, %c0_0, %c0_1] : memref<1x16x128xbf16, #tpu.memory_space<vmem>>, vector<1x16x128xbf16>
    %1 = vector.shape_cast %0 : vector<1x16x128xbf16> to vector<16x128xbf16>
    %c0_2 = arith.constant 0 : index
    %c0_3 = arith.constant 0 : index
    %2 = vector.load %arg3[%c0_2, %c0_3] : memref<128x256xbf16, #tpu.memory_space<vmem>>, vector<128x256xbf16>
    %cst = arith.constant dense<0.000000e+00> : vector<16x256xf32>
    %3 = tpu.matmul %1, %2, %cst {dimension_numbers = #tpu.dot_dimension_numbers<[1], [0], [0], [1], [0, 0, 1, 1], [], []>} : vector<16x128xbf16>, vector<128x256xbf16>, vector<16x256xf32> -> vector<16x256xf32>
    %c0_4 = arith.constant 0 : index
    %c0_5 = arith.constant 0 : index
    %4 = vector.load %arg4[%c0_4, %c0_5] : memref<128x128xbf16, #tpu.memory_space<vmem>>, vector<128x128xbf16>
    %cst_6 = arith.constant dense<0.000000e+00> : vector<16x128xf32>
    %5 = tpu.matmul %1, %4, %cst_6 {dimension_numbers = #tpu.dot_dimension_numbers<[1], [0], [0], [1], [0, 0, 1, 1], [], []>} : vector<16x128xbf16>, vector<128x128xbf16>, vector<16x128xf32> -> vector<16x128xf32>
    %c0_7 = arith.constant 0 : index
    %c0_8 = arith.constant 0 : index
    %6 = vector.load %arg6[%c0_7, %c0_8] : memref<1x128xf32, #tpu.memory_space<vmem>>, vector<1x128xf32>
    %7 = vector.broadcast %6 : vector<1x128xf32> to vector<16x128xf32>
    %8 = arith.addf %5, %7 : vector<16x128xf32>
    %c0_9 = arith.constant 0 : index
    %c0_10 = arith.constant 0 : index
    %9 = vector.load %arg2[%c0_9, %c0_10] : memref<16x16xf32, #tpu.memory_space<vmem>>, vector<16x16xf32>
    %c0_11 = arith.constant 0 : index
    %c0_12 = arith.constant 0 : index
    %10 = vector.load %arg5[%c0_11, %c0_12] : memref<1x256xf32, #tpu.memory_space<vmem>>, vector<1x256xf32>
    %cst_13 = arith.constant dense<0.000000e+00> : vector<16x256xf32>
    %11 = tpu.matmul %9, %3, %cst_13 {dimension_numbers = #tpu.dot_dimension_numbers<[1], [0], [0], [1], [0, 0, 1, 1], [], []>} : vector<16x16xf32>, vector<16x256xf32>, vector<16x256xf32> -> vector<16x256xf32>
    %12 = vector.broadcast %10 : vector<1x256xf32> to vector<16x256xf32>
    %13 = arith.addf %11, %12 : vector<16x256xf32>
    %14 = vector.extract_strided_slice %13 {offsets = [0, 0], sizes = [16, 128], strides = [1, 1]} : vector<16x256xf32> to vector<16x128xf32>
    %15 = vector.extract_strided_slice %13 {offsets = [0, 128], sizes = [16, 128], strides = [1, 1]} : vector<16x256xf32> to vector<16x128xf32>
    %16 = arith.addf %14, %8 : vector<16x128xf32>
    %17 = arith.negf %15 : vector<16x128xf32>
    %18 = math.exp %17 : vector<16x128xf32>
    %cst_14 = arith.constant 1.000000e+00 : f32
    %19 = vector.broadcast %cst_14 : f32 to vector<16x128xf32>
    %20 = arith.addf %19, %18 : vector<16x128xf32>
    %21 = arith.divf %19, %20 : vector<16x128xf32>
    %22 = arith.mulf %16, %21 : vector<16x128xf32>
    %23 = arith.truncf %22 : vector<16x128xf32> to vector<16x128xbf16>
    %c0_15 = arith.constant 0 : index
    %c0_16 = arith.constant 0 : index
    %c0_17 = arith.constant 0 : index
    %24 = vector.load %arg7[%c0_15, %c0_16, %c0_17] : memref<1x16x128xbf16, #tpu.memory_space<vmem>>, vector<1x16x128xbf16>
    %25 = vector.shape_cast %24 : vector<1x16x128xbf16> to vector<16x128xbf16>
    %26 = vector.shape_cast %23 : vector<16x128xbf16> to vector<1x16x128xbf16>
    tpu.vector_store %arg7[%c0_15, %c0_16, %c0_17], %26 {strides = array<i32>} : memref<1x16x128xbf16, #tpu.memory_space<vmem>>, vector<1x16x128xbf16>,
    return
  }
  func.func @transform_0(%arg0: i32) -> (i32, i32, i32) {
    %c0_i32 = arith.constant 0 : i32
    %c0_i32_0 = arith.constant 0 : i32
    %c0_i32_1 = arith.constant 0 : i32
    return %arg0, %c0_i32, %c0_i32_0 : i32, i32, i32
  }
  func.func @transform_1(%arg0: i32) -> (i32, i32) {
    %c0_i32 = arith.constant 0 : i32
    %c0_i32_0 = arith.constant 0 : i32
    %c0_i32_1 = arith.constant 0 : i32
    return %c0_i32, %c0_i32_0 : i32, i32
  }
  func.func @transform_2(%arg0: i32) -> (i32, i32) {
    %c0_i32 = arith.constant 0 : i32
    %c0_i32_0 = arith.constant 0 : i32
    %c0_i32_1 = arith.constant 0 : i32
    return %c0_i32, %c0_i32_0 : i32, i32
  }
  func.func @transform_3(%arg0: i32) -> (i32, i32) {
    %c0_i32 = arith.constant 0 : i32
    %c0_i32_0 = arith.constant 0 : i32
    %c0_i32_1 = arith.constant 0 : i32
    return %c0_i32, %c0_i32_0 : i32, i32
  }
  func.func @transform_4(%arg0: i32) -> (i32, i32) {
    %c0_i32 = arith.constant 0 : i32
    %c0_i32_0 = arith.constant 0 : i32
    %c0_i32_1 = arith.constant 0 : i32
    return %c0_i32, %c0_i32_0 : i32, i32
  }
  func.func @transform_5(%arg0: i32) -> (i32, i32) {
    %c0_i32 = arith.constant 0 : i32
    %c0_i32_0 = arith.constant 0 : i32
    %c0_i32_1 = arith.constant 0 : i32
    return %c0_i32, %c0_i32_0 : i32, i32
  }
  func.func @transform_6(%arg0: i32) -> (i32, i32, i32) {
    %c0_i32 = arith.constant 0 : i32
    %c0_i32_0 = arith.constant 0 : i32
    %c0_i32_1 = arith.constant 0 : i32
    return %arg0, %c0_i32, %c0_i32_0 : i32, i32, i32
  }
}

</mosaic_0001>

<llo_original>
// kernel: tpu_custom_call.1
$region0: #{tpu_custom_call.1}
  #allocation0 [shape = 'u32[]', space=smem, size = 0x4, offset = 0x4, fixed_abs, tag = 'smem constant byte address 0x4 - core index']
  #allocation1 [shape = 'u32[72,128]{1,0:T(1,128)}', space=vmem, size = 0x9000, scoped, tag = 'internal scratch']
  %s0 = inlined_call_operand.hbm [shape: bf16[2,16,128], index: 0, kind: input, shape index: {}]
  %s1 = inlined_call_operand.hbm [shape: f32[16,16], index: 1, kind: input, shape index: {}]
  %s2 = inlined_call_operand.hbm [shape: bf16[128,256], index: 2, kind: input, shape index: {}]
  %s3 = inlined_call_operand.hbm [shape: bf16[128,128], index: 3, kind: input, shape index: {}]
  %s4 = inlined_call_operand.vmem [shape: f32[1,256], index: 4, kind: input, shape index: {}]
  %s5 = inlined_call_operand.vmem [shape: f32[1,128], index: 5, kind: input, shape index: {}]
  %s6 = inlined_call_operand.hbm [shape: bf16[2,16,128], index: 6, kind: output, shape index: {}]
  %s7 = sld [smem:[#allocation0]]
  $region73: #{tpu_custom_call.1} parent=0
    _
  %s9 = ssub.s32 1, %s7
  %s10 = scalar_select 0, %s9, %s7
  $region1: #{tpu_custom_call.1} parent=0
    #allocation2 [shape = 'u8[8192]{0}', space=vmem, size = 0x2000, scoped, tag = 'input window, operand 0']
    #allocation3 [shape = 's32[2]{0}', space=sflag, size = 0x8, scoped, tag = 'scoped memory for tpu_custom_call.1']
    #allocation4 [shape = 's32[2]{0}', space=sflag, size = 0x8, scoped, tag = 'scoped memory for tpu_custom_call.1']
    #allocation5 [shape = 'u8[8192]{0}', space=vmem, size = 0x2000, scoped, tag = 'input window, operand 1, single buffered']
    #allocation6 [shape = 's32[1]{0}', space=sflag, size = 0x4, scoped, tag = 'scoped memory for tpu_custom_call.1']
    #allocation7 [shape = 'u8[65536]{0}', space=vmem, size = 0x10000, scoped, tag = 'input window, operand 2, single buffered']
    #allocation8 [shape = 'u8[32768]{0}', space=vmem, size = 0x8000, scoped, tag = 'input window, operand 3, single buffered']
    #allocation9 [shape = 's32[1]{0}', space=sflag, size = 0x4, scoped, tag = 'scoped memory for tpu_custom_call.1']
    #allocation10 [shape = 'u8[8192]{0}', space=vmem, size = 0x2000, scoped, tag = 'output window, operand 0']
    %11 = vsyncpa [#allocation3], 0
    %s12 = scalar_lea.sflag [#allocation3], 1
    %13 = vsyncpa %s12, 0
    %14 = vsyncpa [#allocation6], 0
    %15 = vsyncpa [#allocation9], 0
    %16 = vsyncpa [#allocation4], 0
    %s17 = scalar_lea.sflag [#allocation4], 1
    %18 = vsyncpa %s17, 0
    loop: start=0, step=1, limit=4
    $region2: #{tpu_custom_call.1} parent=1 // loop_pre_header
      _
    $region3: #{tpu_custom_call.1} parent=1 // loop_header
      %s20 = sphi 0, %s24
      %p21 = scmp.ge.s32.totalorder %s20, 4
      %s30 = sphi 0, %s32
      %s33 = sphi 0, %s30
      %s34 = sphi 0, %s33
      %s50 = sphi 0, %s34
      %s54 = sphi 0, %s54
      %s56 = sphi 0, %s54
      %s57 = sphi 0, %s56
      %s71 = sphi 0, %s57
      %s75 = sphi 0, %s75
      %s77 = sphi 0, %s75
      %s78 = sphi 0, %s77
      %s92 = sphi 0, %s78
      %s96 = sphi 0, %s96
      %s98 = sphi 0, %s96
      %s99 = sphi 0, %s98
      %s113 = sphi 0, %s99
      %s117 = sphi 0, %s117
      %s119 = sphi 0, %s117
      %s120 = sphi 0, %s119
      %s134 = sphi 0, %s120
      %s138 = sphi 0, %s138
      %s140 = sphi 0, %s138
      %s141 = sphi 0, %s140
      %s155 = sphi 0, %s141
      %s161 = sphi 0, %s163
      %s164 = sphi 0, %s161
      %s165 = sphi 0, %s164
      %s181 = sphi 0, %s165
    $region4: #{tpu_custom_call.1} parent=1 // loop_header_branch
      %23 = sbr.rel (%p21) target = $region8
    $region5: #{tpu_custom_call.1} parent=1 // loop_body
      %s25 = ssub.s32 %s20, 1
      %s26 = ssub.s32 %s20, 2
      %s27 = sadd.s32 %s20, 1
      %s28 = ssub.s32 %s20, %s27
      %p29 = scmp.eq.s32.totalorder %s28, 0
      %s31 = sadd.s32 %s30, 1
      %s32 = scalar_select %p29, %s30, %s31
      %p35 = pneg %p29
      %p36 = scmp.eq.s32.totalorder %s20, 1
      %p37 = por %p35, %p36
      %p38 = scmp.ne.s32.totalorder %s30, %s33
      %p39 = scmp.eq.s32.totalorder %s20, 0
      %p40 = por %p38, %p39
      %p41 = scmp.ne.s32.totalorder %s30, %s33
      %p42 = scmp.eq.s32.totalorder %s25, 1
      %p43 = por %p41, %p42
      %p44 = scmp.ne.s32.totalorder %s33, %s34
      %p45 = scmp.eq.s32.totalorder %s25, 0
      %p46 = por %p44, %p45
      %p47 = scmp.ne.s32.totalorder %s33, %s34
      %p48 = scmp.eq.s32.totalorder %s26, 1
      %p49 = por %p47, %p48
      %p51 = scmp.ne.s32.totalorder %s34, %s50
      %p52 = scmp.eq.s32.totalorder %s26, 0
      %p53 = por %p51, %p52
      %s55 = sadd.s32 %s54, 1
      %p58 = scmp.eq.s32.totalorder %s20, 1
      %p59 = scmp.ne.s32.totalorder %s54, %s56
      %p60 = scmp.eq.s32.totalorder %s20, 0
      %p61 = por %p59, %p60
      %p62 = scmp.ne.s32.totalorder %s54, %s56
      %p63 = scmp.eq.s32.totalorder %s25, 1
      %p64 = por %p62, %p63
      %p65 = scmp.ne.s32.totalorder %s56, %s57
      %p66 = scmp.eq.s32.totalorder %s25, 0
      %p67 = por %p65, %p66
      %p68 = scmp.ne.s32.totalorder %s56, %s57
      %p69 = scmp.eq.s32.totalorder %s26, 1
      %p70 = por %p68, %p69
      %p72 = scmp.ne.s32.totalorder %s57, %s71
      %p73 = scmp.eq.s32.totalorder %s26, 0
      %p74 = por %p72, %p73
      %s76 = sadd.s32 %s75, 1
      %p79 = scmp.eq.s32.totalorder %s20, 1
      %p80 = scmp.ne.s32.totalorder %s75, %s77
      %p81 = scmp.eq.s32.totalorder %s20, 0
      %p82 = por %p80, %p81
      %p83 = scmp.ne.s32.totalorder %s75, %s77
      %p84 = scmp.eq.s32.totalorder %s25, 1
      %p85 = por %p83, %p84
      %p86 = scmp.ne.s32.totalorder %s77, %s78
      %p87 = scmp.eq.s32.totalorder %s25, 0
      %p88 = por %p86, %p87
      %p89 = scmp.ne.s32.totalorder %s77, %s78
      %p90 = scmp.eq.s32.totalorder %s26, 1
      %p91 = por %p89, %p90
      %p93 = scmp.ne.s32.totalorder %s78, %s92
      %p94 = scmp.eq.s32.totalorder %s26, 0
      %p95 = por %p93, %p94
      %s97 = sadd.s32 %s96, 1
      %p100 = scmp.eq.s32.totalorder %s20, 1
      %p101 = scmp.ne.s32.totalorder %s96, %s98
      %p102 = scmp.eq.s32.totalorder %s20, 0
      %p103 = por %p101, %p102
      %p104 = scmp.ne.s32.totalorder %s96, %s98
      %p105 = scmp.eq.s32.totalorder %s25, 1
      %p106 = por %p104, %p105
      %p107 = scmp.ne.s32.totalorder %s98, %s99
      %p108 = scmp.eq.s32.totalorder %s25, 0
      %p109 = por %p107, %p108
      %p110 = scmp.ne.s32.totalorder %s98, %s99
      %p111 = scmp.eq.s32.totalorder %s26, 1
      %p112 = por %p110, %p111
      %p114 = scmp.ne.s32.totalorder %s99, %s113
      %p115 = scmp.eq.s32.totalorder %s26, 0
      %p116 = por %p114, %p115
      %s118 = sadd.s32 %s117, 1
      %p121 = scmp.eq.s32.totalorder %s20, 1
      %p122 = scmp.ne.s32.totalorder %s117, %s119
      %p123 = scmp.eq.s32.totalorder %s20, 0
      %p124 = por %p122, %p123
      %p125 = scmp.ne.s32.totalorder %s117, %s119
      %p126 = scmp.eq.s32.totalorder %s25, 1
      %p127 = por %p125, %p126
      %p128 = scmp.ne.s32.totalorder %s119, %s120
      %p129 = scmp.eq.s32.totalorder %s25, 0
      %p130 = por %p128, %p129
      %p131 = scmp.ne.s32.totalorder %s119, %s120
      %p132 = scmp.eq.s32.totalorder %s26, 1
      %p133 = por %p131, %p132
      %p135 = scmp.ne.s32.totalorder %s120, %s134
      %p136 = scmp.eq.s32.totalorder %s26, 0
      %p137 = por %p135, %p136
      %s139 = sadd.s32 %s138, 1
      %p142 = scmp.eq.s32.totalorder %s20, 1
      %p143 = scmp.ne.s32.totalorder %s138, %s140
      %p144 = scmp.eq.s32.totalorder %s20, 0
      %p145 = por %p143, %p144
      %p146 = scmp.ne.s32.totalorder %s138, %s140
      %p147 = scmp.eq.s32.totalorder %s25, 1
      %p148 = por %p146, %p147
      %p149 = scmp.ne.s32.totalorder %s140, %s141
      %p150 = scmp.eq.s32.totalorder %s25, 0
      %p151 = por %p149, %p150
      %p152 = scmp.ne.s32.totalorder %s140, %s141
      %p153 = scmp.eq.s32.totalorder %s26, 1
      %p154 = por %p152, %p153
      %p156 = scmp.ne.s32.totalorder %s141, %s155
      %p157 = scmp.eq.s32.totalorder %s26, 0
      %p158 = por %p156, %p157
      %s159 = ssub.s32 %s20, %s27
      %p160 = scmp.eq.s32.totalorder %s159, 0
      %s162 = sadd.s32 %s161, 1
      %s163 = scalar_select %p160, %s161, %s162
      %p166 = pneg %p160
      %p167 = scmp.eq.s32.totalorder %s20, 1
      %p168 = por %p166, %p167
      %p169 = scmp.ne.s32.totalorder %s161, %s164
      %p170 = scmp.eq.s32.totalorder %s20, 0
      %p171 = por %p169, %p170
      %p172 = scmp.ne.s32.totalorder %s161, %s164
      %p173 = scmp.eq.s32.totalorder %s25, 1
      %p174 = por %p172, %p173
      %p175 = scmp.ne.s32.totalorder %s164, %s165
      %p176 = scmp.eq.s32.totalorder %s25, 0
      %p177 = por %p175, %p176
      %p178 = scmp.ne.s32.totalorder %s164, %s165
      %p179 = scmp.eq.s32.totalorder %s26, 1
      %p180 = por %p178, %p179
      %p182 = scmp.ne.s32.totalorder %s165, %s181
      %p183 = scmp.eq.s32.totalorder %s26, 0
      %p184 = por %p182, %p183
      %p185 = scmp.le.s32.totalorder 1, %s20
      %p186 = scmp.lt.s32.totalorder %s20, 3
      %p187 = pnand %p185, %p186
      %p188 = pneg %p187
      // Predicated region
      $region9: #{tpu_custom_call.1} parent=5 // pred_check
        _
      $region10: #{tpu_custom_call.1} parent=5 // pred_check_branch
        %190 = sbr.rel (%p187) target = $region12
      $region11: #{tpu_custom_call.1} parent=5 // pred_region
        %s191 = ssub.s32 %s20, 1
        // Predicated region
        $region13: #{tpu_custom_call.1} parent=11 // pred_check
          %p192 = pneg %p67
        $region14: #{tpu_custom_call.1} parent=11 // pred_check_branch
          %194 = sbr.rel (%p192) target = $region16
        $region15: #{tpu_custom_call.1} parent=11 // pred_region
          %196 = vsyncadd [#allocation6], 0
          %s197 = sshll.u32 %s1, 4
          %s198 = int_to_ptr.hbm [resolvable:$true] %s197
          %s199 = sshll.u32 [#allocation5], 4
          %s200 = int_to_ptr.vmem [resolvable:$true] %s199
          %205 = dma.hbm_to_vmem [thread:$0]  %s198, 256, %s200, [#allocation6], 128, 128, 8
        $region16: #{tpu_custom_call.1} parent=11 // pred_fallthru
          _
        // Predicated region
        $region17: #{tpu_custom_call.1} parent=11 // pred_check
          %p206 = pneg %p88
        $region18: #{tpu_custom_call.1} parent=11 // pred_check_branch
          %208 = sbr.rel (%p206) target = $region20
        $region19: #{tpu_custom_call.1} parent=11 // pred_region
          %210 = vsyncadd [#allocation6], 0
          %s211 = sshll.u32 %s2, 4
          %s212 = int_to_ptr.hbm [resolvable:$true] %s211
          %s213 = sshll.u32 [#allocation7], 4
          %s214 = int_to_ptr.vmem [resolvable:$true] %s213
          %219 = dma.hbm_to_vmem [thread:$0]  %s212, 2048, %s214, [#allocation6], 128, 128, 8
        $region20: #{tpu_custom_call.1} parent=11 // pred_fallthru
          _
        // Predicated region
        $region21: #{tpu_custom_call.1} parent=11 // pred_check
          %p220 = pneg %p109
        $region22: #{tpu_custom_call.1} parent=11 // pred_check_branch
          %222 = sbr.rel (%p220) target = $region24
        $region23: #{tpu_custom_call.1} parent=11 // pred_region
          %224 = vsyncadd [#allocation9], 0
          %s225 = sshll.u32 %s3, 4
          %s226 = int_to_ptr.hbm [resolvable:$true] %s225
          %s227 = sshll.u32 [#allocation8], 4
          %s228 = int_to_ptr.vmem [resolvable:$true] %s227
          %233 = dma.hbm_to_vmem [thread:$0]  %s226, 1024, %s228, [#allocation9], 64, 64, 4
        $region24: #{tpu_custom_call.1} parent=11 // pred_fallthru
          _
        // Predicated region
        $region25: #{tpu_custom_call.1} parent=11 // pred_check
          %p234 = pneg %p130
        $region26: #{tpu_custom_call.1} parent=11 // pred_check_branch
          %236 = sbr.rel (%p234) target = $region28
        $region27: #{tpu_custom_call.1} parent=11 // pred_region
          _
        $region28: #{tpu_custom_call.1} parent=11 // pred_fallthru
          _
        // Predicated region
        $region29: #{tpu_custom_call.1} parent=11 // pred_check
          %p237 = pneg %p151
        $region30: #{tpu_custom_call.1} parent=11 // pred_check_branch
          %239 = sbr.rel (%p237) target = $region32
        $region31: #{tpu_custom_call.1} parent=11 // pred_region
          _
        $region32: #{tpu_custom_call.1} parent=11 // pred_fallthru
          _
      $region12: #{tpu_custom_call.1} parent=5 // pred_fallthru
        _
      %p240 = scmp.lt.s32.totalorder %s20, 2
      // Predicated region
      $region33: #{tpu_custom_call.1} parent=5 // pred_check
        %p241 = pneg %p240
      $region34: #{tpu_custom_call.1} parent=5 // pred_check_branch
        %243 = sbr.rel (%p241) target = $region36
      $region35: #{tpu_custom_call.1} parent=5 // pred_region
        // Predicated region
        $region37: #{tpu_custom_call.1} parent=35 // pred_check
          %p244 = pneg %p40
        $region38: #{tpu_custom_call.1} parent=35 // pred_check_branch
          %246 = sbr.rel (%p244) target = $region40
        $region39: #{tpu_custom_call.1} parent=35 // pred_region
          %s247 = sand.u32 %s30, 1
          %s248 = scalar_lea.sflag [#allocation3], %s247
          %s249 = sand.u32 %s30, 1
          %s250 = smul.addr %s249, 8
          %s251 = scalar_lea.vmem [#allocation2], %s250
          %253 = vsyncadd %s248, 0
          %s254 = smul.addr %s20, 2
          %s255 = smul.addr %s254, 4
          %s256 = scalar_lea.hbm %s0, %s255
          %s257 = sshll.u32 %s256, 4
          %s258 = int_to_ptr.hbm [resolvable:$true] %s257
          %s259 = sshll.u32 %s251, 4
          %s260 = int_to_ptr.vmem [resolvable:$true] %s259
          %265 = dma.hbm_to_vmem [thread:$0]  %s258, 128, %s260, %s248, 64, 64, 4
        $region40: #{tpu_custom_call.1} parent=35 // pred_fallthru
          _
      $region36: #{tpu_custom_call.1} parent=5 // pred_fallthru
        _
      %p266 = scmp.le.s32.totalorder 1, %s20
      %p267 = scmp.lt.s32.totalorder %s20, 3
      %p268 = pnand %p266, %p267
      %p269 = pneg %p268
      // Predicated region
      $region41: #{tpu_custom_call.1} parent=5 // pred_check
        _
      $region42: #{tpu_custom_call.1} parent=5 // pred_check_branch
        %271 = sbr.rel (%p268) target = $region44
      $region43: #{tpu_custom_call.1} parent=5 // pred_region
        %s272 = ssub.s32 %s20, 1
        %s273 = sand.u32 %s33, 1
        %s274 = scalar_lea.sflag [#allocation3], %s273
        %s275 = sand.u32 %s33, 1
        %s276 = smul.addr %s275, 8
        %s277 = scalar_lea.vmem [#allocation2], %s276
        // Predicated region
        $region45: #{tpu_custom_call.1} parent=43 // pred_check
          %p278 = pneg %p46
        $region46: #{tpu_custom_call.1} parent=43 // pred_check_branch
          %280 = sbr.rel (%p278) target = $region48
        $region47: #{tpu_custom_call.1} parent=43 // pred_region
          %282 = dma.done %s274, 128
        $region48: #{tpu_custom_call.1} parent=43 // pred_fallthru
          _
        // Predicated region
        $region49: #{tpu_custom_call.1} parent=43 // pred_check
          %p283 = pneg %p67
        $region50: #{tpu_custom_call.1} parent=43 // pred_check_branch
          %285 = sbr.rel (%p283) target = $region52
        $region51: #{tpu_custom_call.1} parent=43 // pred_region
          %287 = dma.done [#allocation6], 256
        $region52: #{tpu_custom_call.1} parent=43 // pred_fallthru
          _
        // Predicated region
        $region53: #{tpu_custom_call.1} parent=43 // pred_check
          %p288 = pneg %p88
        $region54: #{tpu_custom_call.1} parent=43 // pred_check_branch
          %290 = sbr.rel (%p288) target = $region56
        $region55: #{tpu_custom_call.1} parent=43 // pred_region
          %292 = dma.done [#allocation6], 2048
        $region56: #{tpu_custom_call.1} parent=43 // pred_fallthru
          _
        // Predicated region
        $region57: #{tpu_custom_call.1} parent=43 // pred_check
          %p293 = pneg %p109
        $region58: #{tpu_custom_call.1} parent=43 // pred_check_branch
          %295 = sbr.rel (%p293) target = $region60
        $region59: #{tpu_custom_call.1} parent=43 // pred_region
          %297 = dma.done [#allocation9], 1024
        $region60: #{tpu_custom_call.1} parent=43 // pred_fallthru
          _
        %s298 = sand.u32 %s33, 1
        %s299 = scalar_lea.sflag [#allocation3], %s298
        %s300 = sand.u32 %s33, 1
        %s301 = smul.addr %s300, 8
        %s302 = scalar_lea.vmem [#allocation2], %s301
        %p303 = pneg %p46
        %p304 = pneg %p43
        %p305 = pneg %p67
        %p306 = pneg %p64
        %p307 = pneg %p88
        %p308 = pneg %p85
        %p309 = pneg %p109
        %p310 = pneg %p106
        %p311 = pneg %p130
        %p312 = pneg %p127
        %p313 = pneg %p151
        %p314 = pneg %p148
        %p315 = pneg %p177
        %p316 = pneg %p174
        %s317 = sand.u32 %s164, 1
        %s318 = scalar_lea.sflag [#allocation4], %s317
        %s319 = sand.u32 %s164, 1
        %s320 = smul.addr %s319, 8
        %s321 = scalar_lea.vmem [#allocation10], %s320
        %v322 = vld [vmem:[%s277] sm:$0xf]
        %v323 = vld [vmem:[%s277 + $0x4] sm:$0xf]
        %v324 = vld [vmem:[#allocation7] sm:$0xff]
        %v325 = vld [vmem:[#allocation7 + $0x8] sm:$0xff]
        %v326 = vld [vmem:[#allocation7 + $0x10] sm:$0xff]
        %v327 = vld [vmem:[#allocation7 + $0x18] sm:$0xff]
        %v328 = vld [vmem:[#allocation7 + $0x20] sm:$0xff]
        %v329 = vld [vmem:[#allocation7 + $0x28] sm:$0xff]
        %v330 = vld [vmem:[#allocation7 + $0x30] sm:$0xff]
        %v331 = vld [vmem:[#allocation7 + $0x38] sm:$0xff]
        %v332 = vld [vmem:[#allocation7 + $0x40] sm:$0xff]
        %v333 = vld [vmem:[#allocation7 + $0x48] sm:$0xff]
        %v334 = vld [vmem:[#allocation7 + $0x50] sm:$0xff]
        %v335 = vld [vmem:[#allocation7 + $0x58] sm:$0xff]
        %v336 = vld [vmem:[#allocation7 + $0x60] sm:$0xff]
        %v337 = vld [vmem:[#allocation7 + $0x68] sm:$0xff]
        %v338 = vld [vmem:[#allocation7 + $0x70] sm:$0xff]
        %v339 = vld [vmem:[#allocation7 + $0x78] sm:$0xff]
        %v342 = vunpack.c.l.b16 %v322
        %v343 = vunpack.c.l.b16 %v323
        %v344 = vpack.c.b16 %v343, %v342
        %v362 = vunpack.c.l.b16 %v324
        %v363 = vunpack.c.h.b16 %v324
        %v364 = vunpack.c.l.b16 %v325
        %v365 = vunpack.c.h.b16 %v325
        %v366 = vunpack.c.l.b16 %v326
        %v367 = vunpack.c.h.b16 %v326
        %v368 = vunpack.c.l.b16 %v327
        %v369 = vunpack.c.h.b16 %v327
        %v370 = vunpack.c.l.b16 %v328
        %v371 = vunpack.c.h.b16 %v328
        %v372 = vunpack.c.l.b16 %v329
        %v373 = vunpack.c.h.b16 %v329
        %v374 = vunpack.c.l.b16 %v330
        %v375 = vunpack.c.h.b16 %v330
        %v376 = vunpack.c.l.b16 %v331
        %v377 = vunpack.c.h.b16 %v331
        %v378 = vunpack.c.l.b16 %v332
        %v379 = vunpack.c.h.b16 %v332
        %v380 = vunpack.c.l.b16 %v333
        %v381 = vunpack.c.h.b16 %v333
        %v382 = vunpack.c.l.b16 %v334
        %v383 = vunpack.c.h.b16 %v334
        %v384 = vunpack.c.l.b16 %v335
        %v385 = vunpack.c.h.b16 %v335
        %v386 = vunpack.c.l.b16 %v336
        %v387 = vunpack.c.h.b16 %v336
        %v388 = vunpack.c.l.b16 %v337
        %v389 = vunpack.c.h.b16 %v337
        %v390 = vunpack.c.l.b16 %v338
        %v391 = vunpack.c.h.b16 %v338
        %v392 = vunpack.c.l.b16 %v339
        %v393 = vunpack.c.h.b16 %v339
        %v394 = vpack.c.b16 %v364, %v362
        %v395 = vpack.c.b16 %v365, %v363
        %v396 = vpack.c.b16 %v368, %v366
        %v397 = vpack.c.b16 %v369, %v367
        %v398 = vpack.c.b16 %v372, %v370
        %v399 = vpack.c.b16 %v373, %v371
        %v400 = vpack.c.b16 %v376, %v374
        %v401 = vpack.c.b16 %v377, %v375
        %v402 = vpack.c.b16 %v380, %v378
        %v403 = vpack.c.b16 %v381, %v379
        %v404 = vpack.c.b16 %v384, %v382
        %v405 = vpack.c.b16 %v385, %v383
        %v406 = vpack.c.b16 %v388, %v386
        %v407 = vpack.c.b16 %v389, %v387
        %v408 = vpack.c.b16 %v392, %v390
        %v409 = vpack.c.b16 %v393, %v391
        %426 = vmatpush.bf16.msra.mxu0 %v408
        %427 = vmatpush.bf16.msra.mxu0 %v406
        %428 = vmatpush.bf16.msra.mxu0 %v404
        %429 = vmatpush.bf16.msra.mxu0 %v402
        %430 = vmatpush.bf16.msra.mxu0 %v400
        %431 = vmatpush.bf16.msra.mxu0 %v398
        %432 = vmatpush.bf16.msra.mxu0 %v396
        %433 = vmatpush.bf16.msra.mxu0 %v394
        %434 = vmatmul.bf16.gmra.mxu0 %v344
        %v435 = vpop.f32.mrf.mxu0
        %v436 = vadd.f32 0.0, %v435
        %v437 = vpop.f32.mrf.mxu0
        %v438 = vadd.f32 0.0, %v437
        %439 = vdwg.mxu0
        %440 = vmatpush.bf16.msra.mxu0 %v409
        %441 = vmatpush.bf16.msra.mxu0 %v407
        %442 = vmatpush.bf16.msra.mxu0 %v405
        %443 = vmatpush.bf16.msra.mxu0 %v403
        %444 = vmatpush.bf16.msra.mxu0 %v401
        %445 = vmatpush.bf16.msra.mxu0 %v399
        %446 = vmatpush.bf16.msra.mxu0 %v397
        %447 = vmatpush.bf16.msra.mxu0 %v395
        %448 = vmatmul.bf16.gmra.mxu0 %v344
        %v449 = vpop.f32.mrf.mxu0
        %v450 = vadd.f32 0.0, %v449
        %v451 = vpop.f32.mrf.mxu0
        %v452 = vadd.f32 0.0, %v451
        %453 = vdwg.mxu0
        %v454 = vld [vmem:[#allocation8] sm:$0xf]
        %v455 = vld [vmem:[#allocation8 + $0x4] sm:$0xf]
        %v456 = vld [vmem:[#allocation8 + $0x8] sm:$0xf]
        %v457 = vld [vmem:[#allocation8 + $0xc] sm:$0xf]
        %v458 = vld [vmem:[#allocation8 + $0x10] sm:$0xf]
        %v459 = vld [vmem:[#allocation8 + $0x14] sm:$0xf]
        %v460 = vld [vmem:[#allocation8 + $0x18] sm:$0xf]
        %v461 = vld [vmem:[#allocation8 + $0x1c] sm:$0xf]
        %v462 = vld [vmem:[#allocation8 + $0x20] sm:$0xf]
        %v463 = vld [vmem:[#allocation8 + $0x24] sm:$0xf]
        %v464 = vld [vmem:[#allocation8 + $0x28] sm:$0xf]
        %v465 = vld [vmem:[#allocation8 + $0x2c] sm:$0xf]
        %v466 = vld [vmem:[#allocation8 + $0x30] sm:$0xf]
        %v467 = vld [vmem:[#allocation8 + $0x34] sm:$0xf]
        %v468 = vld [vmem:[#allocation8 + $0x38] sm:$0xf]
        %v469 = vld [vmem:[#allocation8 + $0x3c] sm:$0xf]
        %v470 = vld [vmem:[%s5] sm:$0x1]
        %v472 = vperm.slane %v470, 0
        %v490 = vunpack.c.l.b16 %v454
        %v491 = vunpack.c.l.b16 %v455
        %v492 = vunpack.c.l.b16 %v456
        %v493 = vunpack.c.l.b16 %v457
        %v494 = vunpack.c.l.b16 %v458
        %v495 = vunpack.c.l.b16 %v459
        %v496 = vunpack.c.l.b16 %v460
        %v497 = vunpack.c.l.b16 %v461
        %v498 = vunpack.c.l.b16 %v462
        %v499 = vunpack.c.l.b16 %v463
        %v500 = vunpack.c.l.b16 %v464
        %v501 = vunpack.c.l.b16 %v465
        %v502 = vunpack.c.l.b16 %v466
        %v503 = vunpack.c.l.b16 %v467
        %v504 = vunpack.c.l.b16 %v468
        %v505 = vunpack.c.l.b16 %v469
        %v506 = vpack.c.b16 %v491, %v490
        %v507 = vpack.c.b16 %v493, %v492
        %v508 = vpack.c.b16 %v495, %v494
        %v509 = vpack.c.b16 %v497, %v496
        %v510 = vpack.c.b16 %v499, %v498
        %v511 = vpack.c.b16 %v501, %v500
        %v512 = vpack.c.b16 %v503, %v502
        %v513 = vpack.c.b16 %v505, %v504
        %522 = vmatpush.bf16.msra.mxu0 %v513
        %523 = vmatpush.bf16.msra.mxu0 %v512
        %524 = vmatpush.bf16.msra.mxu0 %v511
        %525 = vmatpush.bf16.msra.mxu0 %v510
        %526 = vmatpush.bf16.msra.mxu0 %v509
        %527 = vmatpush.bf16.msra.mxu0 %v508
        %528 = vmatpush.bf16.msra.mxu0 %v507
        %529 = vmatpush.bf16.msra.mxu0 %v506
        %530 = vmatmul.bf16.gmra.mxu0 %v344
        %v531 = vpop.f32.mrf.mxu0
        %v532 = vadd.f32 %v472, %v531
        %v533 = vpop.f32.mrf.mxu0
        %v534 = vadd.f32 %v472, %v533
        %535 = vdwg.mxu0
        %v536 = vld [vmem:[#allocation5] sm:$0xff]
        %v537 = vld [vmem:[#allocation5 + $0x8] sm:$0xff]
        %v538 = vld [vmem:[%s4] sm:$0x3]
        %v540 = vperm.slane %v538, 0
        %v541 = vperm.slane %v538, 1
        %vm544 = vcmask 130048
        %v546 = vsel %vm544, %v536, 0
        %v549 = vsel %vm544, %v537, 0
        %551 = vmatpush.msra.mxu0 0.0
        %552 = vmatpush.msra.mxu0 0.0
        %553 = vmatpush.msra.mxu0 0.0
        %554 = vmatpush.msra.mxu0 0.0
        %555 = vmatpush.msra.mxu0 0.0
        %556 = vmatpush.msra.mxu0 0.0
        %557 = vmatpush.msra.mxu0 0.0
        %558 = vmatpush.msra.mxu0 0.0
        %559 = vmatpush.msra.mxu0 0.0
        %560 = vmatpush.msra.mxu0 0.0
        %561 = vmatpush.msra.mxu0 0.0
        %562 = vmatpush.msra.mxu0 0.0
        %563 = vmatpush.msra.mxu0 0.0
        %564 = vmatpush.msra.mxu0 0.0
        %565 = vmatpush.msra.mxu0 %v438
        %566 = vmatpush.msra.mxu0 %v436
        %567 = vmatmul.f32.gmra.mxu0 %v546
        %v568 = vpop.f32.mrf.mxu0
        %v569 = vadd.f32 %v540, %v568
        %570 = vmatmul.f32.gmra.mxu0 %v549
        %v571 = vpop.f32.mrf.mxu0
        %v572 = vadd.f32 %v540, %v571
        %573 = vdwg.mxu0
        %574 = vmatpush.msra.mxu0 0.0
        %575 = vmatpush.msra.mxu0 0.0
        %576 = vmatpush.msra.mxu0 0.0
        %577 = vmatpush.msra.mxu0 0.0
        %578 = vmatpush.msra.mxu0 0.0
        %579 = vmatpush.msra.mxu0 0.0
        %580 = vmatpush.msra.mxu0 0.0
        %581 = vmatpush.msra.mxu0 0.0
        %582 = vmatpush.msra.mxu0 0.0
        %583 = vmatpush.msra.mxu0 0.0
        %584 = vmatpush.msra.mxu0 0.0
        %585 = vmatpush.msra.mxu0 0.0
        %586 = vmatpush.msra.mxu0 0.0
        %587 = vmatpush.msra.mxu0 0.0
        %588 = vmatpush.msra.mxu0 %v452
        %589 = vmatpush.msra.mxu0 %v450
        %590 = vmatmul.f32.gmra.mxu0 %v546
        %v591 = vpop.f32.mrf.mxu0
        %v592 = vadd.f32 %v541, %v591
        %593 = vmatmul.f32.gmra.mxu0 %v549
        %v594 = vpop.f32.mrf.mxu0
        %v595 = vadd.f32 %v541, %v594
        %596 = vdwg.mxu0
        %v597 = vadd.f32 %v569, %v532
        %v598 = vadd.f32 %v572, %v534
        %v599 = vxor.u32 %v592, 2147483648
        %v600 = vxor.u32 %v595, 2147483648
        %v601 = vmul.f32 %v599, 1.442695
        %v602 = vpow.pop %v601
        %v603 = vmul.f32 %v600, 1.442695
        %v604 = vpow.pop %v603
        %v605 = vadd.f32 %v602, 1.0
        %v606 = vadd.f32 %v604, 1.0
        %v607 = vrcp.pop %v605
        %v608 = vmul.f32 %v605, %v607
        %v609 = vsub.f32 1.0, %v608
        %v610 = vmul.f32 %v607, %v609
        %v611 = vadd.f32 %v607, %v610
        %vm612 = vweird.f32 %v605
        %vm613 = vweird.f32 %v607
        %vm614 = vmor %vm612, %vm613
        %v615 = vsel %vm614, %v607, %v611
        %v616 = vand.u32 2147483647, %v605
        %vm617 = vcmp.eq.f32.partialorder %v616, 8.507059e+37
        %v618 = vand.u32 %v605, 2147483648
        %v619 = vor.u32 1.1754944e-38, %v618
        %v620 = vsel %vm617, %v619, %v615
        %v621 = vmul.f32 1.0, %v620
        %v622 = vrcp.pop %v606
        %v623 = vmul.f32 %v606, %v622
        %v624 = vsub.f32 1.0, %v623
        %v625 = vmul.f32 %v622, %v624
        %v626 = vadd.f32 %v622, %v625
        %vm627 = vweird.f32 %v606
        %vm628 = vweird.f32 %v622
        %vm629 = vmor %vm627, %vm628
        %v630 = vsel %vm629, %v622, %v626
        %v631 = vand.u32 2147483647, %v606
        %vm632 = vcmp.eq.f32.partialorder %v631, 8.507059e+37
        %v633 = vand.u32 %v606, 2147483648
        %v634 = vor.u32 1.1754944e-38, %v633
        %v635 = vsel %vm632, %v634, %v630
        %v636 = vmul.f32 1.0, %v635
        %v637 = vmul.f32 %v597, %v621
        %v638 = vmul.f32 %v598, %v636
        %v639 = vpack.c.bf16 %v637, %v637
        %v640 = vpack.c.bf16 %v638, %v638
        %641 = vst [vmem:[%s321] sm:$0xf] %v639
        %642 = vst [vmem:[%s321 + $0x4] sm:$0xf] %v640
        %s643 = sand.u32 %s164, 1
        %s644 = scalar_lea.sflag [#allocation4], %s643
        %s645 = sand.u32 %s164, 1
        %s646 = smul.addr %s645, 8
        %s647 = scalar_lea.vmem [#allocation10], %s646
        // Predicated region
        $region61: #{tpu_custom_call.1} parent=43 // pred_check
          %p648 = pneg %p174
        $region62: #{tpu_custom_call.1} parent=43 // pred_check_branch
          %650 = sbr.rel (%p648) target = $region64
        $region63: #{tpu_custom_call.1} parent=43 // pred_region
          %652 = vsyncadd %s644, 0
          %s653 = smul.addr %s25, 2
          %s654 = smul.addr %s653, 4
          %s655 = scalar_lea.hbm %s6, %s654
          %s656 = sshll.u32 %s647, 4
          %s657 = int_to_ptr.vmem [resolvable:$true] %s656
          %s658 = sshll.u32 %s655, 4
          %s659 = int_to_ptr.hbm [resolvable:$true] %s658
          %664 = dma.vmem_to_hbm [thread:$0]  %s657, 128, %s659, %s644, 64, 64, 4
        $region64: #{tpu_custom_call.1} parent=43 // pred_fallthru
          _
      $region44: #{tpu_custom_call.1} parent=5 // pred_fallthru
        _
      %p665 = scmp.le.s32.totalorder 2, %s20
      // Predicated region
      $region65: #{tpu_custom_call.1} parent=5 // pred_check
        %p666 = pneg %p665
      $region66: #{tpu_custom_call.1} parent=5 // pred_check_branch
        %668 = sbr.rel (%p666) target = $region68
      $region67: #{tpu_custom_call.1} parent=5 // pred_region
        %s669 = ssub.s32 %s20, 2
        // Predicated region
        $region69: #{tpu_custom_call.1} parent=67 // pred_check
          %p670 = pneg %p180
        $region70: #{tpu_custom_call.1} parent=67 // pred_check_branch
          %672 = sbr.rel (%p670) target = $region72
        $region71: #{tpu_custom_call.1} parent=67 // pred_region
          %s673 = sand.u32 %s165, 1
          %s674 = scalar_lea.sflag [#allocation4], %s673
          %s675 = sand.u32 %s165, 1
          %s676 = smul.addr %s675, 8
          %s677 = scalar_lea.vmem [#allocation10], %s676
          %679 = dma.done %s674, 128
        $region72: #{tpu_custom_call.1} parent=67 // pred_fallthru
          _
      $region68: #{tpu_custom_call.1} parent=5 // pred_fallthru
        _
    $region6: #{tpu_custom_call.1} parent=1 // loop_footer
      %s24 = sadd.s32 1, %s20
    $region7: #{tpu_custom_call.1} parent=1 // loop_footer_branch
      %19 = sbr.rel target = $region3
    $region8: #{tpu_custom_call.1} parent=1 // loop_exit
      _
    %680 = vsyncpa [#allocation3], 1
    %s681 = scalar_lea.sflag [#allocation3], 1
    %682 = vsyncpa %s681, 1
    %683 = vsyncpa [#allocation6], 1
    %684 = vsyncpa [#allocation9], 1
    %685 = vsyncpa [#allocation4], 1
    %s686 = scalar_lea.sflag [#allocation4], 1
    %687 = vsyncpa %s686, 1

</llo_original>
